<compile_context>
chip_gen: v7x
topology: tpu7x:2x2x1
jax: 0.10.0
libtpu: 0.0.40
codegen_flags: <defaults>
</compile_context>

<pallas_src>
import jax
import jax.numpy as jnp
from jax.experimental import pallas as pl
from jax.experimental.pallas import tpu as pltpu


def _bahdanau_kernel(wq_ref, k_ref, ua_t_ref, va_ref, ctx_ref, w_ref):
    TB, S, H = k_ref.shape

    k3 = k_ref[...]                                   # (TB, S, H)
    k2 = k3.reshape(TB * S, H)                        # leading-dim collapse (layout-preserving)

    # Keys projection on the MXU with M = TB*S (Ua passed pre-transposed).
    uk = jnp.dot(k2, ua_t_ref[...], preferred_element_type=jnp.float32)    # (TB*S, H)

    # Add the hoisted query projection (ba+bu already folded in) and tanh (EUP).
    e = jnp.tanh(uk.reshape(TB, S, H) + wq_ref[...][:, None, :])           # (TB, S, H)

    # Scores: contract H against the Va row without materializing e.T
    # (VPU multiply + lane reduce). bv is omitted — it cancels in softmax.
    scores = jnp.sum(e * va_ref[...], axis=-1)                             # (TB, S)

    # Softmax over S (lane axis). Exact reciprocal keeps the 1e-5 tolerance.
    m = jnp.max(scores, axis=-1, keepdims=True)
    p = jnp.exp(scores - m)
    w = p * pl.reciprocal(jnp.sum(p, axis=-1, keepdims=True), approx=False)  # (TB, S)

    # Context: batched (1,S)@(S,H) per batch on the MXU.
    ctx = jnp.einsum(
        "tqs,tsh->tqh", w[:, None, :].astype(k3.dtype), k3,
        preferred_element_type=jnp.float32)                                # (TB, 1, H)

    ctx_ref[...] = ctx.astype(ctx_ref.dtype)
    w_ref[...] = w.astype(w_ref.dtype)                                     # lane-dense (TB, S)


def _choose_tb(B, S, H, itemsize, vmem_budget_bytes=24 << 20):
    """Pick batches-per-step: VMEM-budgeted (v7x-safe), multiple of 8, divides B."""
    # Keys are the dominant stream; assume double-buffering + per-batch extras.
    bytes_per_batch = 2 * S * H * itemsize + 8 * (2 * H + S)
    tb = max(1, min(B, vmem_budget_bytes // max(bytes_per_batch, 1)))
    # Prefer >= 2 grid steps so both v7x TensorCores get work (free on v5e/v6e).
    if tb >= B and B >= 16:
        tb = B // 2
    if tb >= B:
        return B
    tb = max(8, (tb // 8) * 8)           # sublane constraint for TB < B blocks
    while tb > 8 and B % tb != 0:
        tb -= 8
    return tb if (tb >= 8 and B % tb == 0) else B


def bahdanau_attention(query, keys, Wa, ba, Ua, bu, Va, bv):
    """query: (B,1,H), keys: (B,S,H). Returns (context (B,1,H), weights (B,1,S))."""
    B, _, H = query.shape
    _, S, _ = keys.shape
    dtype = query.dtype

    # Hoisted query projection: one (B,H)@(H,H) XLA matmul with both biases folded.
    # bv is intentionally dropped: adding a constant to every score is a no-op
    # under softmax (and therefore has no effect on the context either).
    wq = (query.reshape(B, H) @ Wa.T + (ba + bu)).astype(jnp.float32)      # (B, H)
    ua_t = jnp.asarray(Ua.T)                                               # pre-transposed once
    va2 = Va.reshape(1, H)

    TB = _choose_tb(B, S, H, keys.dtype.itemsize)
    assert B % TB == 0, (B, TB)
    grid = (B // TB,)

    ctx, w2d = pl.pallas_call(
        _bahdanau_kernel,
        out_shape=(
            jax.ShapeDtypeStruct((B, 1, H), dtype),
            jax.ShapeDtypeStruct((B, S), dtype),        # lane-dense weights slab
        ),
        grid_spec=pltpu.PrefetchScalarGridSpec(
            num_scalar_prefetch=0,
            grid=grid,
            in_specs=[
                pl.BlockSpec((TB, H), lambda b: (b, 0)),          # Wq (hoisted projection)
                pl.BlockSpec((TB, S, H), lambda b: (b, 0, 0)),    # keys tile
                pl.BlockSpec((H, H), lambda b: (0, 0)),           # Ua^T (resident)
                pl.BlockSpec((1, H), lambda b: (0, 0)),           # Va row (resident)
            ],
            out_specs=[
                pl.BlockSpec((TB, 1, H), lambda b: (b, 0, 0)),    # context
                pl.BlockSpec((TB, S), lambda b: (b, 0)),          # weights
            ],
        ),
        compiler_params=pltpu.CompilerParams(
            dimension_semantics=("parallel",),
            vmem_limit_bytes=28 * 1024 * 1024,
        ),
    )(wq, keys, ua_t, va2)

    # TODO(synk): for very long S, add an inner S-block grid axis with an
    # online-softmax accumulator; for bf16 inputs keep the f32 accumulate path
    # and re-validate tolerance.
    return ctx, w2d.reshape(B, 1, S)


def _reference(query, keys, Wa, ba, Ua, bu, Va, bv):
    # Pure-JAX reference mirroring the PyTorch forward exactly (incl. bv).
    wq = query @ Wa.T + ba                                   # (B,1,H)
    uk = keys @ Ua.T + bu                                    # (B,S,H)
    scores = jnp.tanh(wq + uk) @ Va.reshape(1, -1).T + bv    # (B,S,1)
    scores = jnp.swapaxes(scores, 1, 2)                      # (B,1,S)
    weights = jax.nn.softmax(scores, axis=-1)
    context = weights @ keys                                 # (B,1,H)
    return context, weights


if __name__ == "__main__":
    B, S, H = 16, 8, 32
    key = jax.random.PRNGKey(0)
    k1, k2, k3, k4, k5, k6, k7, k8 = jax.random.split(key, 8)

    # Deterministic synthetic parameters (shapes per nn.Linear in __init__).
    scale = 1.0 / jnp.sqrt(H)
    Wa = jax.random.uniform(k1, (H, H), jnp.float32, -scale, scale)
    ba = jax.random.uniform(k2, (H,), jnp.float32, -scale, scale)
    Ua = jax.random.uniform(k3, (H, H), jnp.float32, -scale, scale)
    bu = jax.random.uniform(k4, (H,), jnp.float32, -scale, scale)
    Va = jax.random.uniform(k5, (1, H), jnp.float32, -scale, scale)
    bv = jax.random.uniform(k6, (1,), jnp.float32, -scale, scale)

    query = jax.random.normal(k7, (B, 1, H), jnp.float32)
    keys = jax.random.normal(k8, (B, S, H), jnp.float32)

    ctx, w = bahdanau_attention(query, keys, Wa, ba, Ua, bu, Va, bv)
    jax.block_until_ready((ctx, w))

    ctx_ref, w_ref = _reference(query, keys, Wa, ba, Ua, bu, Va, bv)
    assert ctx.shape == (B, 1, H) and w.shape == (B, 1, S)
    assert jnp.allclose(ctx, ctx_ref, atol=1e-5, rtol=1e-5), "context mismatch"
    assert jnp.allclose(w, w_ref, atol=1e-5, rtol=1e-5), "weights mismatch"

    print("KERNEL_OK")
</pallas_src>

<mosaic_0001>
module attributes {stable_mosaic.version = 11 : i64} {
  func.func @_bahdanau_kernel(%arg0: i32, %arg1: memref<8x32xf32, #tpu.memory_space<vmem>>, %arg2: memref<8x8x32xf32, #tpu.memory_space<vmem>>, %arg3: memref<32x32xf32, #tpu.memory_space<vmem>>, %arg4: memref<1x32xf32, #tpu.memory_space<vmem>>, %arg5: memref<8x1x32xf32, #tpu.memory_space<vmem>>, %arg6: memref<8x8xf32, #tpu.memory_space<vmem>>) attributes {dimension_semantics = [#tpu.dimension_semantics<parallel>], iteration_bounds = array<i64: 2>, scalar_prefetch = 0 : i64, scratch_operands = 0 : i64, tpu.core_type = #tpu.core_type<tc>, window_params = [{transform_indices = @transform_0, window_bounds = array<i64: 8, 32>}, {transform_indices = @transform_1, window_bounds = array<i64: 8, 8, 32>}, {pipeline_mode = #tpu.pipeline_mode<synchronous>, transform_indices = @transform_2, window_bounds = array<i64: 32, 32>}, {pipeline_mode = #tpu.pipeline_mode<synchronous>, transform_indices = @transform_3, window_bounds = array<i64: 1, 32>}, {transform_indices = @transform_4, window_bounds = array<i64: 8, 1, 32>}, {transform_indices = @transform_5, window_bounds = array<i64: 8, 8>}]} {
    %c0 = arith.constant 0 : index
    %c0_0 = arith.constant 0 : index
    %c0_1 = arith.constant 0 : index
    %0 = vector.load %arg2[%c0, %c0_0, %c0_1] : memref<8x8x32xf32, #tpu.memory_space<vmem>>, vector<8x8x32xf32>
    %1 = vector.shape_cast %0 : vector<8x8x32xf32> to vector<64x32xf32>
    %c0_2 = arith.constant 0 : index
    %c0_3 = arith.constant 0 : index
    %2 = vector.load %arg3[%c0_2, %c0_3] : memref<32x32xf32, #tpu.memory_space<vmem>>, vector<32x32xf32>
    %cst = arith.constant dense<0.000000e+00> : vector<64x32xf32>
    %3 = tpu.matmul %1, %2, %cst {dimension_numbers = #tpu.dot_dimension_numbers<[1], [0], [0], [1], [0, 0, 1, 1], [], []>} : vector<64x32xf32>, vector<32x32xf32>, vector<64x32xf32> -> vector<64x32xf32>
    %4 = vector.shape_cast %3 : vector<64x32xf32> to vector<8x8x32xf32>
    %c0_4 = arith.constant 0 : index
    %c0_5 = arith.constant 0 : index
    %5 = vector.load %arg1[%c0_4, %c0_5] : memref<8x32xf32, #tpu.memory_space<vmem>>, vector<8x32xf32>
    %6 = vector.shape_cast %5 : vector<8x32xf32> to vector<8x1x32xf32>
    %7 = vector.broadcast %6 : vector<8x1x32xf32> to vector<8x8x32xf32>
    %8 = arith.addf %4, %7 : vector<8x8x32xf32>
    %9 = math.tanh %8 : vector<8x8x32xf32>
    %c0_6 = arith.constant 0 : index
    %c0_7 = arith.constant 0 : index
    %10 = vector.load %arg4[%c0_6, %c0_7] : memref<1x32xf32, #tpu.memory_space<vmem>>, vector<1x32xf32>
    %11 = vector.shape_cast %10 : vector<1x32xf32> to vector<1x1x32xf32>
    %12 = vector.broadcast %11 : vector<1x1x32xf32> to vector<8x8x32xf32>
    %13 = arith.mulf %9, %12 : vector<8x8x32xf32>
    %cst_8 = arith.constant dense<0.000000e+00> : vector<8x8xf32>
    %14 = vector.multi_reduction <add>, %13, %cst_8 [2] : vector<8x8x32xf32> to vector<8x8xf32>
    %cst_9 = arith.constant dense<0xFF800000> : vector<8xf32>
    %15 = vector.multi_reduction <maximumf>, %14, %cst_9 [1] : vector<8x8xf32> to vector<8xf32>
    %16 = vector.shape_cast %15 : vector<8xf32> to vector<8x1xf32>
    %17 = vector.broadcast %16 : vector<8x1xf32> to vector<8x8xf32>
    %18 = arith.subf %14, %17 : vector<8x8xf32>
    %19 = math.exp %18 : vector<8x8xf32>
    %cst_10 = arith.constant dense<0.000000e+00> : vector<8xf32>
    %20 = vector.multi_reduction <add>, %19, %cst_10 [1] : vector<8x8xf32> to vector<8xf32>
    %21 = vector.shape_cast %20 : vector<8xf32> to vector<8x1xf32>
    %22 = tpu.reciprocal %21 : vector<8x1xf32> -> vector<8x1xf32>
    %23 = vector.broadcast %22 : vector<8x1xf32> to vector<8x8xf32>
    %24 = arith.mulf %19, %23 : vector<8x8xf32>
    %25 = vector.shape_cast %24 : vector<8x8xf32> to vector<8x1x8xf32>
    "tpu.trace_start"() <{level = 10 : i32, message = "tqs,tsh->tqh"}> : () -> ()
    %cst_11 = arith.constant dense<0.000000e+00> : vector<8x1x32xf32>
    %26 = tpu.matmul %25, %0, %cst_11 {dimension_numbers = #tpu.dot_dimension_numbers<[2], [1], [1], [2], [0, 0, 0, 1, 1, 2], [0], [0]>} : vector<8x1x8xf32>, vector<8x8x32xf32>, vector<8x1x32xf32> -> vector<8x1x32xf32>
    "tpu.trace_stop"() : () -> ()
    %c0_12 = arith.constant 0 : index
    %c0_13 = arith.constant 0 : index
    %c0_14 = arith.constant 0 : index
    %27 = vector.load %arg5[%c0_12, %c0_13, %c0_14] : memref<8x1x32xf32, #tpu.memory_space<vmem>>, vector<8x1x32xf32>
    tpu.vector_store %arg5[%c0_12, %c0_13, %c0_14], %26 {strides = array<i32>} : memref<8x1x32xf32, #tpu.memory_space<vmem>>, vector<8x1x32xf32>,
    %c0_15 = arith.constant 0 : index
    %c0_16 = arith.constant 0 : index
    %28 = vector.load %arg6[%c0_15, %c0_16] : memref<8x8xf32, #tpu.memory_space<vmem>>, vector<8x8xf32>
    tpu.vector_store %arg6[%c0_15, %c0_16], %24 {strides = array<i32>} : memref<8x8xf32, #tpu.memory_space<vmem>>, vector<8x8xf32>,
    return
  }
  func.func @transform_0(%arg0: i32) -> (i32, i32) {
    %c0_i32 = arith.constant 0 : i32
    %c0_i32_0 = arith.constant 0 : i32
    return %arg0, %c0_i32 : i32, i32
  }
  func.func @transform_1(%arg0: i32) -> (i32, i32, i32) {
    %c0_i32 = arith.constant 0 : i32
    %c0_i32_0 = arith.constant 0 : i32
    %c0_i32_1 = arith.constant 0 : i32
    return %arg0, %c0_i32, %c0_i32_0 : i32, i32, i32
  }
  func.func @transform_2(%arg0: i32) -> (i32, i32) {
    %c0_i32 = arith.constant 0 : i32
    %c0_i32_0 = arith.constant 0 : i32
    %c0_i32_1 = arith.constant 0 : i32
    return %c0_i32, %c0_i32_0 : i32, i32
  }
  func.func @transform_3(%arg0: i32) -> (i32, i32) {
    %c0_i32 = arith.constant 0 : i32
    %c0_i32_0 = arith.constant 0 : i32
    %c0_i32_1 = arith.constant 0 : i32
    return %c0_i32, %c0_i32_0 : i32, i32
  }
  func.func @transform_4(%arg0: i32) -> (i32, i32, i32) {
    %c0_i32 = arith.constant 0 : i32
    %c0_i32_0 = arith.constant 0 : i32
    %c0_i32_1 = arith.constant 0 : i32
    return %arg0, %c0_i32, %c0_i32_0 : i32, i32, i32
  }
  func.func @transform_5(%arg0: i32) -> (i32, i32) {
    %c0_i32 = arith.constant 0 : i32
    %c0_i32_0 = arith.constant 0 : i32
    return %arg0, %c0_i32 : i32, i32
  }
}

</mosaic_0001>

<llo_original>
// kernel: tpu_custom_call.1
$region0: #{tpu_custom_call.1}
  #allocation0 [shape = 'u32[]', space=smem, size = 0x4, offset = 0x4, fixed_abs, tag = 'smem constant byte address 0x4 - core index']
  #allocation1 [shape = 'u32[144,128]{1,0:T(1,128)}', space=vmem, size = 0x12000, scoped, tag = 'internal scratch']
  %s0 = inlined_call_operand.hbm [shape: f32[16,32], index: 0, kind: input, shape index: {}]
  %s1 = inlined_call_operand.hbm [shape: f32[16,8,32], index: 1, kind: input, shape index: {}]
  %s2 = inlined_call_operand.hbm [shape: f32[32,32], index: 2, kind: input, shape index: {}]
  %s3 = inlined_call_operand.vmem [shape: f32[1,32], index: 3, kind: input, shape index: {}]
  %s4 = inlined_call_operand.hbm [shape: f32[16,1,32], index: 4, kind: output, shape index: {0}]
  %s5 = inlined_call_operand.vmem [shape: f32[16,8], index: 5, kind: output, shape index: {1}]
  %6 = xla_tuple %s4, %s5
  %s7 = sld [smem:[#allocation0]]
  $region69: #{tpu_custom_call.1} parent=0
    _
  %s9 = ssub.s32 1, %s7
  %s10 = scalar_select 0, %s9, %s7
  $region1: #{tpu_custom_call.1} parent=0
    #allocation2 [shape = 'u8[8192]{0}', space=vmem, size = 0x2000, scoped, tag = 'input window, operand 0']
    #allocation3 [shape = 's32[2]{0}', space=sflag, size = 0x8, scoped, tag = 'scoped memory for tpu_custom_call.1']
    #allocation4 [shape = 's32[2]{0}', space=sflag, size = 0x8, scoped, tag = 'scoped memory for tpu_custom_call.1']
    #allocation5 [shape = 'u8[65536]{0}', space=vmem, size = 0x10000, scoped, tag = 'input window, operand 1']
    #allocation6 [shape = 's32[2]{0}', space=sflag, size = 0x8, scoped, tag = 'scoped memory for tpu_custom_call.1']
    #allocation7 [shape = 'u8[16384]{0}', space=vmem, size = 0x4000, scoped, tag = 'input window, operand 2, single buffered']
    #allocation8 [shape = 'u8[8192]{0}', space=vmem, size = 0x2000, scoped, tag = 'output window, operand 0']
    %11 = vsyncpa [#allocation3], 0
    %s12 = scalar_lea.sflag [#allocation3], 1
    %13 = vsyncpa %s12, 0
    %14 = vsyncpa [#allocation6], 0
    %s15 = scalar_lea.sflag [#allocation6], 1
    %16 = vsyncpa %s15, 0
    %17 = vsyncpa [#allocation4], 0
    %s18 = scalar_lea.sflag [#allocation4], 1
    %19 = vsyncpa %s18, 0
    loop: start=0, step=1, limit=4
    $region2: #{tpu_custom_call.1} parent=1 // loop_pre_header
      _
    $region3: #{tpu_custom_call.1} parent=1 // loop_header
      %s21 = sphi 0, %s25
      %p22 = scmp.ge.s32.totalorder %s21, 4
      %s31 = sphi 0, %s33
      %s34 = sphi 0, %s31
      %s35 = sphi 0, %s34
      %s51 = sphi 0, %s35
      %s57 = sphi 0, %s59
      %s60 = sphi 0, %s57
      %s61 = sphi 0, %s60
      %s77 = sphi 0, %s61
      %s81 = sphi 0, %s81
      %s83 = sphi 0, %s81
      %s84 = sphi 0, %s83
      %s98 = sphi 0, %s84
      %s102 = sphi 0, %s102
      %s104 = sphi 0, %s102
      %s105 = sphi 0, %s104
      %s119 = sphi 0, %s105
      %s125 = sphi 0, %s127
      %s128 = sphi 0, %s125
      %s129 = sphi 0, %s128
      %s145 = sphi 0, %s129
      %s151 = sphi 0, %s153
      %s154 = sphi 0, %s151
      %s155 = sphi 0, %s154
      %s171 = sphi 0, %s155
    $region4: #{tpu_custom_call.1} parent=1 // loop_header_branch
      %24 = sbr.rel (%p22) target = $region8
    $region5: #{tpu_custom_call.1} parent=1 // loop_body
      %s26 = ssub.s32 %s21, 1
      %s27 = ssub.s32 %s21, 2
      %s28 = sadd.s32 %s21, 1
      %s29 = ssub.s32 %s21, %s28
      %p30 = scmp.eq.s32.totalorder %s29, 0
      %s32 = sadd.s32 %s31, 1
      %s33 = scalar_select %p30, %s31, %s32
      %p36 = pneg %p30
      %p37 = scmp.eq.s32.totalorder %s21, 1
      %p38 = por %p36, %p37
      %p39 = scmp.ne.s32.totalorder %s31, %s34
      %p40 = scmp.eq.s32.totalorder %s21, 0
      %p41 = por %p39, %p40
      %p42 = scmp.ne.s32.totalorder %s31, %s34
      %p43 = scmp.eq.s32.totalorder %s26, 1
      %p44 = por %p42, %p43
      %p45 = scmp.ne.s32.totalorder %s34, %s35
      %p46 = scmp.eq.s32.totalorder %s26, 0
      %p47 = por %p45, %p46
      %p48 = scmp.ne.s32.totalorder %s34, %s35
      %p49 = scmp.eq.s32.totalorder %s27, 1
      %p50 = por %p48, %p49
      %p52 = scmp.ne.s32.totalorder %s35, %s51
      %p53 = scmp.eq.s32.totalorder %s27, 0
      %p54 = por %p52, %p53
      %s55 = ssub.s32 %s21, %s28
      %p56 = scmp.eq.s32.totalorder %s55, 0
      %s58 = sadd.s32 %s57, 1
      %s59 = scalar_select %p56, %s57, %s58
      %p62 = pneg %p56
      %p63 = scmp.eq.s32.totalorder %s21, 1
      %p64 = por %p62, %p63
      %p65 = scmp.ne.s32.totalorder %s57, %s60
      %p66 = scmp.eq.s32.totalorder %s21, 0
      %p67 = por %p65, %p66
      %p68 = scmp.ne.s32.totalorder %s57, %s60
      %p69 = scmp.eq.s32.totalorder %s26, 1
      %p70 = por %p68, %p69
      %p71 = scmp.ne.s32.totalorder %s60, %s61
      %p72 = scmp.eq.s32.totalorder %s26, 0
      %p73 = por %p71, %p72
      %p74 = scmp.ne.s32.totalorder %s60, %s61
      %p75 = scmp.eq.s32.totalorder %s27, 1
      %p76 = por %p74, %p75
      %p78 = scmp.ne.s32.totalorder %s61, %s77
      %p79 = scmp.eq.s32.totalorder %s27, 0
      %p80 = por %p78, %p79
      %s82 = sadd.s32 %s81, 1
      %p85 = scmp.eq.s32.totalorder %s21, 1
      %p86 = scmp.ne.s32.totalorder %s81, %s83
      %p87 = scmp.eq.s32.totalorder %s21, 0
      %p88 = por %p86, %p87
      %p89 = scmp.ne.s32.totalorder %s81, %s83
      %p90 = scmp.eq.s32.totalorder %s26, 1
      %p91 = por %p89, %p90
      %p92 = scmp.ne.s32.totalorder %s83, %s84
      %p93 = scmp.eq.s32.totalorder %s26, 0
      %p94 = por %p92, %p93
      %p95 = scmp.ne.s32.totalorder %s83, %s84
      %p96 = scmp.eq.s32.totalorder %s27, 1
      %p97 = por %p95, %p96
      %p99 = scmp.ne.s32.totalorder %s84, %s98
      %p100 = scmp.eq.s32.totalorder %s27, 0
      %p101 = por %p99, %p100
      %s103 = sadd.s32 %s102, 1
      %p106 = scmp.eq.s32.totalorder %s21, 1
      %p107 = scmp.ne.s32.totalorder %s102, %s104
      %p108 = scmp.eq.s32.totalorder %s21, 0
      %p109 = por %p107, %p108
      %p110 = scmp.ne.s32.totalorder %s102, %s104
      %p111 = scmp.eq.s32.totalorder %s26, 1
      %p112 = por %p110, %p111
      %p113 = scmp.ne.s32.totalorder %s104, %s105
      %p114 = scmp.eq.s32.totalorder %s26, 0
      %p115 = por %p113, %p114
      %p116 = scmp.ne.s32.totalorder %s104, %s105
      %p117 = scmp.eq.s32.totalorder %s27, 1
      %p118 = por %p116, %p117
      %p120 = scmp.ne.s32.totalorder %s105, %s119
      %p121 = scmp.eq.s32.totalorder %s27, 0
      %p122 = por %p120, %p121
      %s123 = ssub.s32 %s21, %s28
      %p124 = scmp.eq.s32.totalorder %s123, 0
      %s126 = sadd.s32 %s125, 1
      %s127 = scalar_select %p124, %s125, %s126
      %p130 = pneg %p124
      %p131 = scmp.eq.s32.totalorder %s21, 1
      %p132 = por %p130, %p131
      %p133 = scmp.ne.s32.totalorder %s125, %s128
      %p134 = scmp.eq.s32.totalorder %s21, 0
      %p135 = por %p133, %p134
      %p136 = scmp.ne.s32.totalorder %s125, %s128
      %p137 = scmp.eq.s32.totalorder %s26, 1
      %p138 = por %p136, %p137
      %p139 = scmp.ne.s32.totalorder %s128, %s129
      %p140 = scmp.eq.s32.totalorder %s26, 0
      %p141 = por %p139, %p140
      %p142 = scmp.ne.s32.totalorder %s128, %s129
      %p143 = scmp.eq.s32.totalorder %s27, 1
      %p144 = por %p142, %p143
      %p146 = scmp.ne.s32.totalorder %s129, %s145
      %p147 = scmp.eq.s32.totalorder %s27, 0
      %p148 = por %p146, %p147
      %s149 = ssub.s32 %s21, %s28
      %p150 = scmp.eq.s32.totalorder %s149, 0
      %s152 = sadd.s32 %s151, 1
      %s153 = scalar_select %p150, %s151, %s152
      %p156 = pneg %p150
      %p157 = scmp.eq.s32.totalorder %s21, 1
      %p158 = por %p156, %p157
      %p159 = scmp.ne.s32.totalorder %s151, %s154
      %p160 = scmp.eq.s32.totalorder %s21, 0
      %p161 = por %p159, %p160
      %p162 = scmp.ne.s32.totalorder %s151, %s154
      %p163 = scmp.eq.s32.totalorder %s26, 1
      %p164 = por %p162, %p163
      %p165 = scmp.ne.s32.totalorder %s154, %s155
      %p166 = scmp.eq.s32.totalorder %s26, 0
      %p167 = por %p165, %p166
      %p168 = scmp.ne.s32.totalorder %s154, %s155
      %p169 = scmp.eq.s32.totalorder %s27, 1
      %p170 = por %p168, %p169
      %p172 = scmp.ne.s32.totalorder %s155, %s171
      %p173 = scmp.eq.s32.totalorder %s27, 0
      %p174 = por %p172, %p173
      %p175 = scmp.le.s32.totalorder 1, %s21
      %p176 = scmp.lt.s32.totalorder %s21, 3
      %p177 = pnand %p175, %p176
      %p178 = pneg %p177
      // Predicated region
      $region9: #{tpu_custom_call.1} parent=5 // pred_check
        _
      $region10: #{tpu_custom_call.1} parent=5 // pred_check_branch
        %180 = sbr.rel (%p177) target = $region12
      $region11: #{tpu_custom_call.1} parent=5 // pred_region
        %s181 = ssub.s32 %s21, 1
        // Predicated region
        $region13: #{tpu_custom_call.1} parent=11 // pred_check
          %p182 = pneg %p94
        $region14: #{tpu_custom_call.1} parent=11 // pred_check_branch
          %184 = sbr.rel (%p182) target = $region16
        $region15: #{tpu_custom_call.1} parent=11 // pred_region
          %s186 = ssub.s32 512, 512
          %187 = vsyncadd [#allocation6], %s186
          %s188 = sshll.u32 [#allocation7], 4
          %s189 = int_to_ptr.vmem [resolvable:$true] %s188
          %194 = dma.hbm_to_vmem [thread:$0]  %s2, 512, %s189, [#allocation6], 128, 128, 8
        $region16: #{tpu_custom_call.1} parent=11 // pred_fallthru
          _
        // Predicated region
        $region17: #{tpu_custom_call.1} parent=11 // pred_check
          %p195 = pneg %p115
        $region18: #{tpu_custom_call.1} parent=11 // pred_check_branch
          %197 = sbr.rel (%p195) target = $region20
        $region19: #{tpu_custom_call.1} parent=11 // pred_region
          _
        $region20: #{tpu_custom_call.1} parent=11 // pred_fallthru
          _
      $region12: #{tpu_custom_call.1} parent=5 // pred_fallthru
        _
      %p198 = scmp.lt.s32.totalorder %s21, 2
      // Predicated region
      $region21: #{tpu_custom_call.1} parent=5 // pred_check
        %p199 = pneg %p198
      $region22: #{tpu_custom_call.1} parent=5 // pred_check_branch
        %201 = sbr.rel (%p199) target = $region24
      $region23: #{tpu_custom_call.1} parent=5 // pred_region
        // Predicated region
        $region25: #{tpu_custom_call.1} parent=23 // pred_check
          %p202 = pneg %p41
        $region26: #{tpu_custom_call.1} parent=23 // pred_check_branch
          %204 = sbr.rel (%p202) target = $region28
        $region27: #{tpu_custom_call.1} parent=23 // pred_region
          %s205 = sand.u32 %s31, 1
          %s206 = scalar_lea.sflag [#allocation3], %s205
          %s207 = sand.u32 %s31, 1
          %s208 = smul.addr %s207, 8
          %s209 = scalar_lea.vmem [#allocation2], %s208
          %s211 = ssub.s32 128, 128
          %212 = vsyncadd %s206, %s211
          %s213 = smul.addr %s21, 128
          %s214 = scalar_lea.hbm %s0, %s213
          %s216 = sshll.u32 %s209, 4
          %s217 = int_to_ptr.vmem [resolvable:$true] %s216
          %219 = dma.hbm_to_vmem [thread:$0]  %s214, 128, %s217, %s206
        $region28: #{tpu_custom_call.1} parent=23 // pred_fallthru
          _
        // Predicated region
        $region29: #{tpu_custom_call.1} parent=23 // pred_check
          %p220 = pneg %p67
        $region30: #{tpu_custom_call.1} parent=23 // pred_check_branch
          %222 = sbr.rel (%p220) target = $region32
        $region31: #{tpu_custom_call.1} parent=23 // pred_region
          %s223 = sand.u32 %s21, 1
          %s224 = scalar_lea.sflag [#allocation6], %s223
          %s225 = sand.u32 %s57, 1
          %s226 = smul.addr %s225, 64
          %s227 = scalar_lea.vmem [#allocation5], %s226
          %s228 = smul.u32 8, %s21
          %s230 = ssub.s32 1024, 1024
          %231 = vsyncadd %s224, %s230
          %s232 = smul.addr %s228, 128
          %s233 = scalar_lea.hbm %s1, %s232
          %s234 = sshll.u32 %s227, 4
          %s235 = int_to_ptr.vmem [resolvable:$true] %s234
          %240 = dma.hbm_to_vmem [thread:$0]  %s233, 1024, %s235, %s224, 128, 128, 8
        $region32: #{tpu_custom_call.1} parent=23 // pred_fallthru
          _
      $region24: #{tpu_custom_call.1} parent=5 // pred_fallthru
        _
      %p241 = scmp.le.s32.totalorder 1, %s21
      %p242 = scmp.lt.s32.totalorder %s21, 3
      %p243 = pnand %p241, %p242
      %p244 = pneg %p243
      // Predicated region
      $region33: #{tpu_custom_call.1} parent=5 // pred_check
        _
      $region34: #{tpu_custom_call.1} parent=5 // pred_check_branch
        %246 = sbr.rel (%p243) target = $region36
      $region35: #{tpu_custom_call.1} parent=5 // pred_region
        %s247 = ssub.s32 %s21, 1
        %s248 = sand.u32 %s34, 1
        %s249 = scalar_lea.sflag [#allocation3], %s248
        %s250 = sand.u32 %s34, 1
        %s251 = smul.addr %s250, 8
        %s252 = scalar_lea.vmem [#allocation2], %s251
        // Predicated region
        $region37: #{tpu_custom_call.1} parent=35 // pred_check
          %p253 = pneg %p47
        $region38: #{tpu_custom_call.1} parent=35 // pred_check_branch
          %255 = sbr.rel (%p253) target = $region40
        $region39: #{tpu_custom_call.1} parent=35 // pred_region
          %256 = dma.done %s249, 128
        $region40: #{tpu_custom_call.1} parent=35 // pred_fallthru
          _
        %s257 = sand.u32 %s26, 1
        %s258 = scalar_lea.sflag [#allocation6], %s257
        %s259 = sand.u32 %s60, 1
        %s260 = smul.addr %s259, 64
        %s261 = scalar_lea.vmem [#allocation5], %s260
        // Predicated region
        $region41: #{tpu_custom_call.1} parent=35 // pred_check
          %p262 = pneg %p73
        $region42: #{tpu_custom_call.1} parent=35 // pred_check_branch
          %264 = sbr.rel (%p262) target = $region44
        $region43: #{tpu_custom_call.1} parent=35 // pred_region
          %265 = dma.done %s258, 1024
        $region44: #{tpu_custom_call.1} parent=35 // pred_fallthru
          _
        // Predicated region
        $region45: #{tpu_custom_call.1} parent=35 // pred_check
          %p266 = pneg %p94
        $region46: #{tpu_custom_call.1} parent=35 // pred_check_branch
          %268 = sbr.rel (%p266) target = $region48
        $region47: #{tpu_custom_call.1} parent=35 // pred_region
          %269 = dma.done [#allocation6], 512
        $region48: #{tpu_custom_call.1} parent=35 // pred_fallthru
          _
        %s270 = sand.u32 %s34, 1
        %s271 = scalar_lea.sflag [#allocation3], %s270
        %s272 = sand.u32 %s34, 1
        %s273 = smul.addr %s272, 8
        %s274 = scalar_lea.vmem [#allocation2], %s273
        %p275 = pneg %p47
        %p276 = pneg %p44
        %s277 = sand.u32 %s26, 1
        %s278 = scalar_lea.sflag [#allocation6], %s277
        %s279 = sand.u32 %s60, 1
        %s280 = smul.addr %s279, 64
        %s281 = scalar_lea.vmem [#allocation5], %s280
        %p282 = pneg %p73
        %p283 = pneg %p70
        %p284 = pneg %p94
        %p285 = pneg %p91
        %p286 = pneg %p115
        %p287 = pneg %p112
        %p288 = pneg %p141
        %p289 = pneg %p138
        %s290 = sand.u32 %s128, 1
        %s291 = scalar_lea.sflag [#allocation4], %s290
        %s292 = sand.u32 %s128, 1
        %s293 = smul.addr %s292, 8
        %s294 = scalar_lea.vmem [#allocation8], %s293
        %p295 = pneg %p167
        %p296 = pneg %p164
        %p297 = scmp.lt.s32.totalorder %s26, 1
        %s298 = scalar_select %p297, %s26, 1
        %s299 = smul.addr %s298, 8
        %s300 = scalar_lea.vmem %s5, %s299
        %s301 = smul.u32 8, %s26
        %s302 = smul.u32 8, %s26
        %p303 = scmp.lt.s32.totalorder %s26, 1
        %s304 = scalar_select %p303, %s26, 1
        %s305 = smul.addr %s304, 8
        %s306 = scalar_lea.vmem %s5, %s305
        %v307 = vld [vmem:[%s261] sm:$0xff]
        %v308 = vld [vmem:[%s261 + $0x8] sm:$0xff]
        %v309 = vld [vmem:[%s261 + $0x10] sm:$0xff]
        %v310 = vld [vmem:[%s261 + $0x18] sm:$0xff]
        %v311 = vld [vmem:[%s261 + $0x20] sm:$0xff]
        %v312 = vld [vmem:[%s261 + $0x28] sm:$0xff]
        %v313 = vld [vmem:[%s261 + $0x30] sm:$0xff]
        %v314 = vld [vmem:[%s261 + $0x38] sm:$0xff]
        %v315 = vld [vmem:[#allocation7] sm:$0xff]
        %v316 = vld [vmem:[#allocation7 + $0x8] sm:$0xff]
        %v317 = vld [vmem:[#allocation7 + $0x10] sm:$0xff]
        %v318 = vld [vmem:[#allocation7 + $0x18] sm:$0xff]
        %vm319 = vcmask 261120
        %v321 = vsel %vm319, %v307, 0
        %v324 = vsel %vm319, %v308, 0
        %v327 = vsel %vm319, %v309, 0
        %v330 = vsel %vm319, %v310, 0
        %v333 = vsel %vm319, %v311, 0
        %v336 = vsel %vm319, %v312, 0
        %v339 = vsel %vm319, %v313, 0
        %v342 = vsel %vm319, %v314, 0
        %344 = vmatprep.subr.mxu0 0.0
        %345 = vmatpush1.msra.mxu0 %v315
        %346 = vmatprep.subr.mxu0 0.0
        %347 = vmatpush1.msra.mxu0 %v316
        %348 = vmatprep.subr.mxu0 0.0
        %349 = vmatpush1.msra.mxu0 %v317
        %350 = vmatprep.subr.mxu0 0.0
        %351 = vmatpush1.msra.mxu0 %v318
        %352 = vmatprep.subr.mxu0 0.0
        %353 = vmatpush1.msra.mxu0 0.0
        %354 = vmatprep.subr.mxu0 0.0
        %355 = vmatpush1.msra.mxu0 0.0
        %356 = vmatprep.subr.mxu0 0.0
        %357 = vmatpush1.msra.mxu0 0.0
        %358 = vmatprep.subr.mxu0 0.0
        %359 = vmatpush1.msra.mxu0 0.0
        %360 = vmatprep.subr.mxu0 0.0
        %361 = vmatpush1.msra.mxu0 0.0
        %362 = vmatprep.subr.mxu0 0.0
        %363 = vmatpush1.msra.mxu0 0.0
        %364 = vmatprep.subr.mxu0 0.0
        %365 = vmatpush1.msra.mxu0 0.0
        %366 = vmatprep.subr.mxu0 0.0
        %367 = vmatpush1.msra.mxu0 0.0
        %368 = vmatprep.subr.mxu0 0.0
        %369 = vmatpush1.msra.mxu0 0.0
        %370 = vmatprep.subr.mxu0 0.0
        %371 = vmatpush1.msra.mxu0 0.0
        %372 = vmatprep.subr.mxu0 0.0
        %373 = vmatpush1.msra.mxu0 0.0
        %374 = vmatprep.subr.mxu0 0.0
        %375 = vmatpush1.msra.mxu0 0.0
        %376 = vmatprep.subr.mxu0 0.0
        %377 = vmatpush1.msra.mxu0 0.0
        %378 = vmatprep.subr.mxu0 0.0
        %379 = vmatpush1.msra.mxu0 0.0
        %380 = vmatprep.subr.mxu0 0.0
        %381 = vmatpush1.msra.mxu0 0.0
        %382 = vmatprep.subr.mxu0 0.0
        %383 = vmatpush1.msra.mxu0 0.0
        %384 = vmatprep.subr.mxu0 0.0
        %385 = vmatpush1.msra.mxu0 0.0
        %386 = vmatprep.subr.mxu0 0.0
        %387 = vmatpush1.msra.mxu0 0.0
        %388 = vmatprep.subr.mxu0 0.0
        %389 = vmatpush1.msra.mxu0 0.0
        %390 = vmatprep.subr.mxu0 0.0
        %391 = vmatpush1.msra.mxu0 0.0
        %392 = vmatprep.subr.mxu0 0.0
        %393 = vmatpush1.msra.mxu0 0.0
        %394 = vmatprep.subr.mxu0 0.0
        %395 = vmatpush1.msra.mxu0 0.0
        %396 = vmatprep.subr.mxu0 0.0
        %397 = vmatpush1.msra.mxu0 0.0
        %398 = vmatprep.subr.mxu0 0.0
        %399 = vmatpush1.msra.mxu0 0.0
        %400 = vmatprep.subr.mxu0 0.0
        %401 = vmatpush1.msra.mxu0 0.0
        %402 = vmatprep.subr.mxu0 0.0
        %403 = vmatpush1.msra.mxu0 0.0
        %404 = vmatprep.subr.mxu0 0.0
        %405 = vmatpush1.msra.mxu0 0.0
        %406 = vmatprep.subr.mxu0 0.0
        %407 = vmatpush1.msra.mxu0 0.0
        %408 = vmatprep.mubr.f32.mxu0 0.0
        %409 = vmatmul.mubr.f32.gmra.mrb[0].mxu0 %v321
        %v410 = vpop.f32.mrb[0].mxu0
        %v411 = vadd.f32 0.0, %v410
        %v412 = vpop.f32.mrb[0].mxu0
        %413 = vmatprep.mubr.f32.mxu0 0.0
        %414 = vmatmul.mubr.f32.gmra.mrb[0].mxu0 %v324
        %v415 = vpop.f32.mrb[0].mxu0
        %v416 = vadd.f32 0.0, %v415
        %v417 = vpop.f32.mrb[0].mxu0
        %418 = vmatprep.mubr.f32.mxu0 0.0
        %419 = vmatmul.mubr.f32.gmra.mrb[0].mxu0 %v327
        %v420 = vpop.f32.mrb[0].mxu0
        %v421 = vadd.f32 0.0, %v420
        %v422 = vpop.f32.mrb[0].mxu0
        %423 = vmatprep.mubr.f32.mxu0 0.0
        %424 = vmatmul.mubr.f32.gmra.mrb[0].mxu0 %v330
        %v425 = vpop.f32.mrb[0].mxu0
        %v426 = vadd.f32 0.0, %v425
        %v427 = vpop.f32.mrb[0].mxu0
        %428 = vmatprep.mubr.f32.mxu0 0.0
        %429 = vmatmul.mubr.f32.gmra.mrb[0].mxu0 %v333
        %v430 = vpop.f32.mrb[0].mxu0
        %v431 = vadd.f32 0.0, %v430
        %v432 = vpop.f32.mrb[0].mxu0
        %433 = vmatprep.mubr.f32.mxu0 0.0
        %434 = vmatmul.mubr.f32.gmra.mrb[0].mxu0 %v336
        %v435 = vpop.f32.mrb[0].mxu0
        %v436 = vadd.f32 0.0, %v435
        %v437 = vpop.f32.mrb[0].mxu0
        %438 = vmatprep.mubr.f32.mxu0 0.0
        %439 = vmatmul.mubr.f32.gmra.mrb[0].mxu0 %v339
        %v440 = vpop.f32.mrb[0].mxu0
        %v441 = vadd.f32 0.0, %v440
        %v442 = vpop.f32.mrb[0].mxu0
        %443 = vmatprep.mubr.f32.mxu0 0.0
        %444 = vmatmul.mubr.f32.gmra.mrb[0].mxu0 %v342
        %v445 = vpop.f32.mrb[0].mxu0
        %v446 = vadd.f32 0.0, %v445
        %v447 = vpop.f32.mrb[0].mxu0
        %448 = vdwg.mxu0
        %v449 = vld [vmem:[%s252] sm:$0xff]
        %v451 = vcombine.high %v449, %v449
        %v453 = vunpack.c.l.s4 1966171168
        %v454 = vunpack.c.0.s8 %v453
        %v455 = vlaneseq
        %v456 = vshrl.u32 %v455, 7
        %v457 = vsub.s32 %v454, %v456
        %v458 = vrot.slane %v449, %v457
        %v460 = vunpack.c.l.s4 1966171168
        %v461 = vunpack.c.0.s8 %v460
        %v462 = vlaneseq
        %v463 = vshrl.u32 %v462, 7
        %v464 = vsub.s32 %v461, %v463
        %v465 = vrot.slane %v451, %v464
        %v466 = vcombine.high %v458, %v458
        %v467 = vcombine.high %v465, %v465
        %v469 = vunpack.c.l.s4 1966171168
        %v470 = vunpack.c.0.s8 %v469
        %v471 = vlaneseq
        %v472 = vshrl.u32 %v471, 7
        %v473 = vsub.s32 %v470, %v472
        %v474 = vrot.slane %v458, %v473
        %v476 = vunpack.c.l.s4 1966171168
        %v477 = vunpack.c.0.s8 %v476
        %v478 = vlaneseq
        %v479 = vshrl.u32 %v478, 7
        %v480 = vsub.s32 %v477, %v479
        %v481 = vrot.slane %v465, %v480
        %v483 = vunpack.c.l.s4 1966171168
        %v484 = vunpack.c.0.s8 %v483
        %v485 = vlaneseq
        %v486 = vshrl.u32 %v485, 7
        %v487 = vsub.s32 %v484, %v486
        %v488 = vrot.slane %v466, %v487
        %v490 = vunpack.c.l.s4 1966171168
        %v491 = vunpack.c.0.s8 %v490
        %v492 = vlaneseq
        %v493 = vshrl.u32 %v492, 7
        %v494 = vsub.s32 %v491, %v493
        %v495 = vrot.slane %v467, %v494
        %v496 = vcombine.high %v474, %v474
        %v497 = vcombine.high %v481, %v481
        %v498 = vcombine.high %v488, %v488
        %v499 = vcombine.high %v495, %v495
        %v500 = vlaneseq
        %v501 = vshrl.u32 %v500, 7
        %v502 = vsub.s32 0, %v501
        %v503 = vrot.slane %v474, %v502
        %v504 = vlaneseq
        %v505 = vshrl.u32 %v504, 7
        %v506 = vsub.s32 0, %v505
        %v507 = vrot.slane %v488, %v506
        %v508 = vlaneseq
        %v509 = vshrl.u32 %v508, 7
        %v510 = vsub.s32 0, %v509
        %v511 = vrot.slane %v496, %v510
        %v512 = vlaneseq
        %v513 = vshrl.u32 %v512, 7
        %v514 = vsub.s32 0, %v513
        %v515 = vrot.slane %v498, %v514
        %v516 = vlaneseq
        %v517 = vshrl.u32 %v516, 7
        %v518 = vsub.s32 0, %v517
        %v519 = vrot.slane %v481, %v518
        %v520 = vlaneseq
        %v521 = vshrl.u32 %v520, 7
        %v522 = vsub.s32 0, %v521
        %v523 = vrot.slane %v495, %v522
        %v524 = vlaneseq
        %v525 = vshrl.u32 %v524, 7
        %v526 = vsub.s32 0, %v525
        %v527 = vrot.slane %v497, %v526
        %v528 = vlaneseq
        %v529 = vshrl.u32 %v528, 7
        %v530 = vsub.s32 0, %v529
        %v531 = vrot.slane %v499, %v530
        %v540 = vadd.f32 %v411, %v503
        %v541 = vadd.f32 %v416, %v507
        %v542 = vadd.f32 %v421, %v511
        %v543 = vadd.f32 %v426, %v515
        %v544 = vadd.f32 %v431, %v519
        %v545 = vadd.f32 %v436, %v523
        %v546 = vadd.f32 %v441, %v527
        %v547 = vadd.f32 %v446, %v531
        %v548 = vtanh.pop %v540
        %v549 = vtanh.pop %v541
        %v550 = vtanh.pop %v542
        %v551 = vtanh.pop %v543
        %v552 = vtanh.pop %v544
        %v553 = vtanh.pop %v545
        %v554 = vtanh.pop %v546
        %v555 = vtanh.pop %v547
        %v556 = vld [vmem:[%s3] sm:$0x1]
        %v558 = vlaneseq
        %v559 = vshrl.u32 %v558, 7
        %v560 = vsub.s32 0, %v559
        %v561 = vrot.slane %v556, %v560
        %v563 = vmul.f32 %v548, %v561
        %v564 = vmul.f32 %v549, %v561
        %v565 = vmul.f32 %v550, %v561
        %v566 = vmul.f32 %v551, %v561
        %v567 = vmul.f32 %v552, %v561
        %v568 = vmul.f32 %v553, %v561
        %v569 = vmul.f32 %v554, %v561
        %v570 = vmul.f32 %v555, %v561
        %v571 = vsel %vm319, %v563, 0.0
        %572 = vadd.xlane.f32.xlu0 %v571
        %v573 = vpop.xlane.xlu0 %572
        %v574 = vsel %vm319, %v564, 0.0
        %575 = vadd.xlane.f32.xlu0 %v574
        %v576 = vpop.xlane.xlu0 %575
        %v577 = vsel %vm319, %v565, 0.0
        %578 = vadd.xlane.f32.xlu0 %v577
        %v579 = vpop.xlane.xlu0 %578
        %v580 = vsel %vm319, %v566, 0.0
        %581 = vadd.xlane.f32.xlu0 %v580
        %v582 = vpop.xlane.xlu0 %581
        %v583 = vsel %vm319, %v567, 0.0
        %584 = vadd.xlane.f32.xlu0 %v583
        %v585 = vpop.xlane.xlu0 %584
        %v586 = vsel %vm319, %v568, 0.0
        %587 = vadd.xlane.f32.xlu0 %v586
        %v588 = vpop.xlane.xlu0 %587
        %v589 = vsel %vm319, %v569, 0.0
        %590 = vadd.xlane.f32.xlu0 %v589
        %v591 = vpop.xlane.xlu0 %590
        %v592 = vsel %vm319, %v570, 0.0
        %593 = vadd.xlane.f32.xlu0 %v592
        %v594 = vpop.xlane.xlu0 %593
        %v603 = vlaneseq
        %v604 = vand.u32 %v603, 127
        %v605 = vlaneseq
        %v606 = vshrl.u32 %v605, 7
        %v607 = vsub.s32 %v604, %v606
        %v608 = vrot.slane %v573, %v607
        %v609 = vlaneseq
        %v610 = vshrl.u32 %v609, 7
        %v611 = vsub.s32 %v604, %v610
        %v612 = vrot.slane %v576, %v611
        %v613 = vlaneseq
        %v614 = vshrl.u32 %v613, 7
        %v615 = vsub.s32 %v604, %v614
        %v616 = vrot.slane %v579, %v615
        %v617 = vlaneseq
        %v618 = vshrl.u32 %v617, 7
        %v619 = vsub.s32 %v604, %v618
        %v620 = vrot.slane %v582, %v619
        %v621 = vlaneseq
        %v622 = vshrl.u32 %v621, 7
        %v623 = vsub.s32 %v604, %v622
        %v624 = vrot.slane %v585, %v623
        %v625 = vlaneseq
        %v626 = vshrl.u32 %v625, 7
        %v627 = vsub.s32 %v604, %v626
        %v628 = vrot.slane %v588, %v627
        %v629 = vlaneseq
        %v630 = vshrl.u32 %v629, 7
        %v631 = vsub.s32 %v604, %v630
        %v632 = vrot.slane %v591, %v631
        %v633 = vlaneseq
        %v634 = vshrl.u32 %v633, 7
        %v635 = vsub.s32 %v604, %v634
        %v636 = vrot.slane %v594, %v635
        %vm637 = vcmask 1041409
        %v638 = vsel %vm637, %v612, %v608
        %vm639 = vcmask 1042434
        %v640 = vsel %vm639, %v616, %v638
        %vm641 = vcmask 1043459
        %v642 = vsel %vm641, %v620, %v640
        %vm643 = vcmask 1044484
        %v644 = vsel %vm643, %v624, %v642
        %vm645 = vcmask 1045509
        %v646 = vsel %vm645, %v628, %v644
        %vm647 = vcmask 1046534
        %v648 = vsel %vm647, %v632, %v646
        %vm649 = vcmask 1047559
        %v650 = vsel %vm649, %v636, %v648
        %vm652 = vcmask 64512
        %v653 = vsel %vm652, %v650, -inf
        %654 = vmax.xlane.f32.xlu0 %v653
        %v655 = vpop.xlane.xlu0 %654
        %v657 = vlaneseq
        %v658 = vshrl.u32 %v657, 7
        %v659 = vsub.s32 0, %v658
        %v660 = vrot.slane %v655, %v659
        %v661 = vlaneseq
        %v662 = vshrl.u32 %v661, 7
        %v663 = vsub.s32 1, %v662
        %v664 = vrot.slane %v655, %v663
        %v665 = vlaneseq
        %v666 = vshrl.u32 %v665, 7
        %v667 = vsub.s32 2, %v666
        %v668 = vrot.slane %v655, %v667
        %v669 = vlaneseq
        %v670 = vshrl.u32 %v669, 7
        %v671 = vsub.s32 3, %v670
        %v672 = vrot.slane %v655, %v671
        %v673 = vlaneseq
        %v674 = vshrl.u32 %v673, 7
        %v675 = vsub.s32 4, %v674
        %v676 = vrot.slane %v655, %v675
        %v677 = vlaneseq
        %v678 = vshrl.u32 %v677, 7
        %v679 = vsub.s32 5, %v678
        %v680 = vrot.slane %v655, %v679
        %v681 = vlaneseq
        %v682 = vshrl.u32 %v681, 7
        %v683 = vsub.s32 6, %v682
        %v684 = vrot.slane %v655, %v683
        %v685 = vlaneseq
        %v686 = vshrl.u32 %v685, 7
        %v687 = vsub.s32 7, %v686
        %v688 = vrot.slane %v655, %v687
        %v697 = vsub.f32 %v573, %v660
        %v698 = vsub.f32 %v576, %v664
        %v699 = vsub.f32 %v579, %v668
        %v700 = vsub.f32 %v582, %v672
        %v701 = vsub.f32 %v585, %v676
        %v702 = vsub.f32 %v588, %v680
        %v703 = vsub.f32 %v591, %v684
        %v704 = vsub.f32 %v594, %v688
        %v705 = vmul.f32 %v697, 1.442695
        %v706 = vpow.pop %v705
        %v707 = vmul.f32 %v698, 1.442695
        %v708 = vpow.pop %v707
        %v709 = vmul.f32 %v699, 1.442695
        %v710 = vpow.pop %v709
        %v711 = vmul.f32 %v700, 1.442695
        %v712 = vpow.pop %v711
        %v713 = vmul.f32 %v701, 1.442695
        %v714 = vpow.pop %v713
        %v715 = vmul.f32 %v702, 1.442695
        %v716 = vpow.pop %v715
        %v717 = vmul.f32 %v703, 1.442695
        %v718 = vpow.pop %v717
        %v719 = vmul.f32 %v704, 1.442695
        %v720 = vpow.pop %v719
        %729 = vset.pattern.permute.xlu0 0
        %730 = vperm.xlu0 %729, %v706
        %v731 = vpop.permute.xlu0 %730
        %732 = vset.pattern.permute.xlu0 0
        %733 = vperm.xlu0 %732, %v708
        %v734 = vpop.permute.xlu0 %733
        %735 = vset.pattern.permute.xlu0 0
        %736 = vperm.xlu0 %735, %v710
        %v737 = vpop.permute.xlu0 %736
        %738 = vset.pattern.permute.xlu0 0
        %739 = vperm.xlu0 %738, %v712
        %v740 = vpop.permute.xlu0 %739
        %741 = vset.pattern.permute.xlu0 0
        %742 = vperm.xlu0 %741, %v714
        %v743 = vpop.permute.xlu0 %742
        %744 = vset.pattern.permute.xlu0 0
        %745 = vperm.xlu0 %744, %v716
        %v746 = vpop.permute.xlu0 %745
        %747 = vset.pattern.permute.xlu0 0
        %748 = vperm.xlu0 %747, %v718
        %v749 = vpop.permute.xlu0 %748
        %750 = vset.pattern.permute.xlu0 0
        %751 = vperm.xlu0 %750, %v720
        %v752 = vpop.permute.xlu0 %751
        %v753 = vlaneseq
        %v754 = vshrl.u32 %v753, 7
        %v755 = vsub.s32 %v604, %v754
        %v756 = vrot.slane %v731, %v755
        %v757 = vlaneseq
        %v758 = vshrl.u32 %v757, 7
        %v759 = vsub.s32 %v604, %v758
        %v760 = vrot.slane %v734, %v759
        %v761 = vlaneseq
        %v762 = vshrl.u32 %v761, 7
        %v763 = vsub.s32 %v604, %v762
        %v764 = vrot.slane %v737, %v763
        %v765 = vlaneseq
        %v766 = vshrl.u32 %v765, 7
        %v767 = vsub.s32 %v604, %v766
        %v768 = vrot.slane %v740, %v767
        %v769 = vlaneseq
        %v770 = vshrl.u32 %v769, 7
        %v771 = vsub.s32 %v604, %v770
        %v772 = vrot.slane %v743, %v771
        %v773 = vlaneseq
        %v774 = vshrl.u32 %v773, 7
        %v775 = vsub.s32 %v604, %v774
        %v776 = vrot.slane %v746, %v775
        %v777 = vlaneseq
        %v778 = vshrl.u32 %v777, 7
        %v779 = vsub.s32 %v604, %v778
        %v780 = vrot.slane %v749, %v779
        %v781 = vlaneseq
        %v782 = vshrl.u32 %v781, 7
        %v783 = vsub.s32 %v604, %v782
        %v784 = vrot.slane %v752, %v783
        %v785 = vsel %vm637, %v760, %v756
        %v786 = vsel %vm639, %v764, %v785
        %v787 = vsel %vm641, %v768, %v786
        %v788 = vsel %vm643, %v772, %v787
        %v789 = vsel %vm645, %v776, %v788
        %v790 = vsel %vm647, %v780, %v789
        %v791 = vsel %vm649, %v784, %v790
        %v793 = vsel %vm652, %v791, 0.0
        %794 = vadd.xlane.f32.xlu0 %v793
        %v795 = vpop.xlane.xlu0 %794
        %v796 = vrcp.pop %v795
        %v798 = vlaneseq
        %v799 = vshrl.u32 %v798, 7
        %v800 = vsub.s32 0, %v799
        %v801 = vrot.slane %v796, %v800
        %v802 = vlaneseq
        %v803 = vshrl.u32 %v802, 7
        %v804 = vsub.s32 1, %v803
        %v805 = vrot.slane %v796, %v804
        %v806 = vlaneseq
        %v807 = vshrl.u32 %v806, 7
        %v808 = vsub.s32 2, %v807
        %v809 = vrot.slane %v796, %v808
        %v810 = vlaneseq
        %v811 = vshrl.u32 %v810, 7
        %v812 = vsub.s32 3, %v811
        %v813 = vrot.slane %v796, %v812
        %v814 = vlaneseq
        %v815 = vshrl.u32 %v814, 7
        %v816 = vsub.s32 4, %v815
        %v817 = vrot.slane %v796, %v816
        %v818 = vlaneseq
        %v819 = vshrl.u32 %v818, 7
        %v820 = vsub.s32 5, %v819
        %v821 = vrot.slane %v796, %v820
        %v822 = vlaneseq
        %v823 = vshrl.u32 %v822, 7
        %v824 = vsub.s32 6, %v823
        %v825 = vrot.slane %v796, %v824
        %v826 = vlaneseq
        %v827 = vshrl.u32 %v826, 7
        %v828 = vsub.s32 7, %v827
        %v829 = vrot.slane %v796, %v828
        %v838 = vmul.f32 %v706, %v801
        %v839 = vmul.f32 %v708, %v805
        %v840 = vmul.f32 %v710, %v809
        %v841 = vmul.f32 %v712, %v813
        %v842 = vmul.f32 %v714, %v817
        %v843 = vmul.f32 %v716, %v821
        %v844 = vmul.f32 %v718, %v825
        %v845 = vmul.f32 %v720, %v829
        %847 = vset.pattern.permute.xlu0 0
        %848 = vperm.xlu0 %847, %v838
        %v849 = vpop.permute.xlu0 %848
        %v850 = vlaneseq
        %v851 = vshrl.u32 %v850, 7
        %v852 = vsub.s32 %v604, %v851
        %v853 = vrot.slane %v849, %v852
        %v854 = vsel %vm652, %v853, 0
        %856 = vmatprep.subr.mxu0 0.0
        %857 = vmatpush1.msra.mxu0 %v307
        %858 = vmatprep.subr.mxu0 0.0
        %859 = vmatpush1.msra.mxu0 0.0
        %860 = vmatprep.subr.mxu0 0.0
        %861 = vmatpush1.msra.mxu0 0.0
        %862 = vmatprep.subr.mxu0 0.0
        %863 = vmatpush1.msra.mxu0 0.0
        %864 = vmatprep.subr.mxu0 0.0
        %865 = vmatpush1.msra.mxu0 0.0
        %866 = vmatprep.subr.mxu0 0.0
        %867 = vmatpush1.msra.mxu0 0.0
        %868 = vmatprep.subr.mxu0 0.0
        %869 = vmatpush1.msra.mxu0 0.0
        %870 = vmatprep.subr.mxu0 0.0
        %871 = vmatpush1.msra.mxu0 0.0
        %872 = vmatprep.subr.mxu0 0.0
        %873 = vmatpush1.msra.mxu0 0.0
        %874 = vmatprep.subr.mxu0 0.0
        %875 = vmatpush1.msra.mxu0 0.0
        %876 = vmatprep.subr.mxu0 0.0
        %877 = vmatpush1.msra.mxu0 0.0
        %878 = vmatprep.subr.mxu0 0.0
        %879 = vmatpush1.msra.mxu0 0.0
        %880 = vmatprep.subr.mxu0 0.0
        %881 = vmatpush1.msra.mxu0 0.0
        %882 = vmatprep.subr.mxu0 0.0
        %883 = vmatpush1.msra.mxu0 0.0
        %884 = vmatprep.subr.mxu0 0.0
        %885 = vmatpush1.msra.mxu0 0.0
        %886 = vmatprep.subr.mxu0 0.0
        %887 = vmatpush1.msra.mxu0 0.0
        %888 = vmatprep.subr.mxu0 0.0
        %889 = vmatpush1.msra.mxu0 0.0
        %890 = vmatprep.subr.mxu0 0.0
        %891 = vmatpush1.msra.mxu0 0.0
        %892 = vmatprep.subr.mxu0 0.0
        %893 = vmatpush1.msra.mxu0 0.0
        %894 = vmatprep.subr.mxu0 0.0
        %895 = vmatpush1.msra.mxu0 0.0
        %896 = vmatprep.subr.mxu0 0.0
        %897 = vmatpush1.msra.mxu0 0.0
        %898 = vmatprep.subr.mxu0 0.0
        %899 = vmatpush1.msra.mxu0 0.0
        %900 = vmatprep.subr.mxu0 0.0
        %901 = vmatpush1.msra.mxu0 0.0
        %902 = vmatprep.subr.mxu0 0.0
        %903 = vmatpush1.msra.mxu0 0.0
        %904 = vmatprep.subr.mxu0 0.0
        %905 = vmatpush1.msra.mxu0 0.0
        %906 = vmatprep.subr.mxu0 0.0
        %907 = vmatpush1.msra.mxu0 0.0
        %908 = vmatprep.subr.mxu0 0.0
        %909 = vmatpush1.msra.mxu0 0.0
        %910 = vmatprep.subr.mxu0 0.0
        %911 = vmatpush1.msra.mxu0 0.0
        %912 = vmatprep.subr.mxu0 0.0
        %913 = vmatpush1.msra.mxu0 0.0
        %914 = vmatprep.subr.mxu0 0.0
        %915 = vmatpush1.msra.mxu0 0.0
        %916 = vmatprep.subr.mxu0 0.0
        %917 = vmatpush1.msra.mxu0 0.0
        %918 = vmatprep.subr.mxu0 0.0
        %919 = vmatpush1.msra.mxu0 0.0
        %920 = vmatprep.mubr.f32.mxu0 0.0
        %921 = vmatmul.mubr.f32.gmra.mrb[0].mxu0 %v854
        %v922 = vpop.f32.mrb[0].mxu0
        %v923 = vadd.f32 0.0, %v922
        %v924 = vpop.f32.mrb[0].mxu0
        %925 = vdwg.mxu0
        %927 = vset.pattern.permute.xlu0 0
        %928 = vperm.xlu0 %927, %v839
        %v929 = vpop.permute.xlu0 %928
        %v930 = vlaneseq
        %v931 = vshrl.u32 %v930, 7
        %v932 = vsub.s32 %v604, %v931
        %v933 = vrot.slane %v929, %v932
        %v934 = vsel %vm652, %v933, 0
        %936 = vmatprep.subr.mxu0 0.0
        %937 = vmatpush1.msra.mxu0 %v308
        %938 = vmatprep.subr.mxu0 0.0
        %939 = vmatpush1.msra.mxu0 0.0
        %940 = vmatprep.subr.mxu0 0.0
        %941 = vmatpush1.msra.mxu0 0.0
        %942 = vmatprep.subr.mxu0 0.0
        %943 = vmatpush1.msra.mxu0 0.0
        %944 = vmatprep.subr.mxu0 0.0
        %945 = vmatpush1.msra.mxu0 0.0
        %946 = vmatprep.subr.mxu0 0.0
        %947 = vmatpush1.msra.mxu0 0.0
        %948 = vmatprep.subr.mxu0 0.0
        %949 = vmatpush1.msra.mxu0 0.0
        %950 = vmatprep.subr.mxu0 0.0
        %951 = vmatpush1.msra.mxu0 0.0
        %952 = vmatprep.subr.mxu0 0.0
        %953 = vmatpush1.msra.mxu0 0.0
        %954 = vmatprep.subr.mxu0 0.0
        %955 = vmatpush1.msra.mxu0 0.0
        %956 = vmatprep.subr.mxu0 0.0
        %957 = vmatpush1.msra.mxu0 0.0
        %958 = vmatprep.subr.mxu0 0.0
        %959 = vmatpush1.msra.mxu0 0.0
        %960 = vmatprep.subr.mxu0 0.0
        %961 = vmatpush1.msra.mxu0 0.0
        %962 = vmatprep.subr.mxu0 0.0
        %963 = vmatpush1.msra.mxu0 0.0
        %964 = vmatprep.subr.mxu0 0.0
        %965 = vmatpush1.msra.mxu0 0.0
        %966 = vmatprep.subr.mxu0 0.0
        %967 = vmatpush1.msra.mxu0 0.0
        %968 = vmatprep.subr.mxu0 0.0
        %969 = vmatpush1.msra.mxu0 0.0
        %970 = vmatprep.subr.mxu0 0.0
        %971 = vmatpush1.msra.mxu0 0.0
        %972 = vmatprep.subr.mxu0 0.0
        %973 = vmatpush1.msra.mxu0 0.0
        %974 = vmatprep.subr.mxu0 0.0
        %975 = vmatpush1.msra.mxu0 0.0
        %976 = vmatprep.subr.mxu0 0.0
        %977 = vmatpush1.msra.mxu0 0.0
        %978 = vmatprep.subr.mxu0 0.0
        %979 = vmatpush1.msra.mxu0 0.0
        %980 = vmatprep.subr.mxu0 0.0
        %981 = vmatpush1.msra.mxu0 0.0
        %982 = vmatprep.subr.mxu0 0.0
        %983 = vmatpush1.msra.mxu0 0.0
        %984 = vmatprep.subr.mxu0 0.0
        %985 = vmatpush1.msra.mxu0 0.0
        %986 = vmatprep.subr.mxu0 0.0
        %987 = vmatpush1.msra.mxu0 0.0
        %988 = vmatprep.subr.mxu0 0.0
        %989 = vmatpush1.msra.mxu0 0.0
        %990 = vmatprep.subr.mxu0 0.0
        %991 = vmatpush1.msra.mxu0 0.0
        %992 = vmatprep.subr.mxu0 0.0
        %993 = vmatpush1.msra.mxu0 0.0
        %994 = vmatprep.subr.mxu0 0.0
        %995 = vmatpush1.msra.mxu0 0.0
        %996 = vmatprep.subr.mxu0 0.0
        %997 = vmatpush1.msra.mxu0 0.0
        %998 = vmatprep.subr.mxu0 0.0
        %999 = vmatpush1.msra.mxu0 0.0
        %1000 = vmatprep.mubr.f32.mxu0 0.0
        %1001 = vmatmul.mubr.f32.gmra.mrb[0].mxu0 %v934
        %v1002 = vpop.f32.mrb[0].mxu0
        %v1003 = vadd.f32 0.0, %v1002
        %v1004 = vpop.f32.mrb[0].mxu0
        %1005 = vdwg.mxu0
        %1007 = vset.pattern.permute.xlu0 0
        %1008 = vperm.xlu0 %1007, %v840
        %v1009 = vpop.permute.xlu0 %1008
        %v1010 = vlaneseq
        %v1011 = vshrl.u32 %v1010, 7
        %v1012 = vsub.s32 %v604, %v1011
        %v1013 = vrot.slane %v1009, %v1012
        %v1014 = vsel %vm652, %v1013, 0
        %1016 = vmatprep.subr.mxu0 0.0
        %1017 = vmatpush1.msra.mxu0 %v309
        %1018 = vmatprep.subr.mxu0 0.0
        %1019 = vmatpush1.msra.mxu0 0.0
        %1020 = vmatprep.subr.mxu0 0.0
        %1021 = vmatpush1.msra.mxu0 0.0
        %1022 = vmatprep.subr.mxu0 0.0
        %1023 = vmatpush1.msra.mxu0 0.0
        %1024 = vmatprep.subr.mxu0 0.0
        %1025 = vmatpush1.msra.mxu0 0.0
        %1026 = vmatprep.subr.mxu0 0.0
        %1027 = vmatpush1.msra.mxu0 0.0
        %1028 = vmatprep.subr.mxu0 0.0
        %1029 = vmatpush1.msra.mxu0 0.0
        %1030 = vmatprep.subr.mxu0 0.0
        %1031 = vmatpush1.msra.mxu0 0.0
        %1032 = vmatprep.subr.mxu0 0.0
        %1033 = vmatpush1.msra.mxu0 0.0
        %1034 = vmatprep.subr.mxu0 0.0
        %1035 = vmatpush1.msra.mxu0 0.0
        %1036 = vmatprep.subr.mxu0 0.0
        %1037 = vmatpush1.msra.mxu0 0.0
        %1038 = vmatprep.subr.mxu0 0.0
        %1039 = vmatpush1.msra.mxu0 0.0
        %1040 = vmatprep.subr.mxu0 0.0
        %1041 = vmatpush1.msra.mxu0 0.0
        %1042 = vmatprep.subr.mxu0 0.0
        %1043 = vmatpush1.msra.mxu0 0.0
        %1044 = vmatprep.subr.mxu0 0.0
        %1045 = vmatpush1.msra.mxu0 0.0
        %1046 = vmatprep.subr.mxu0 0.0
        %1047 = vmatpush1.msra.mxu0 0.0
        %1048 = vmatprep.subr.mxu0 0.0
        %1049 = vmatpush1.msra.mxu0 0.0
        %1050 = vmatprep.subr.mxu0 0.0
        %1051 = vmatpush1.msra.mxu0 0.0
        %1052 = vmatprep.subr.mxu0 0.0
        %1053 = vmatpush1.msra.mxu0 0.0
        %1054 = vmatprep.subr.mxu0 0.0
        %1055 = vmatpush1.msra.mxu0 0.0
        %1056 = vmatprep.subr.mxu0 0.0
        %1057 = vmatpush1.msra.mxu0 0.0
        %1058 = vmatprep.subr.mxu0 0.0
        %1059 = vmatpush1.msra.mxu0 0.0
        %1060 = vmatprep.subr.mxu0 0.0
        %1061 = vmatpush1.msra.mxu0 0.0
        %1062 = vmatprep.subr.mxu0 0.0
        %1063 = vmatpush1.msra.mxu0 0.0
        %1064 = vmatprep.subr.mxu0 0.0
        %1065 = vmatpush1.msra.mxu0 0.0
        %1066 = vmatprep.subr.mxu0 0.0
        %1067 = vmatpush1.msra.mxu0 0.0
        %1068 = vmatprep.subr.mxu0 0.0
        %1069 = vmatpush1.msra.mxu0 0.0
        %1070 = vmatprep.subr.mxu0 0.0
        %1071 = vmatpush1.msra.mxu0 0.0
        %1072 = vmatprep.subr.mxu0 0.0
        %1073 = vmatpush1.msra.mxu0 0.0
        %1074 = vmatprep.subr.mxu0 0.0
        %1075 = vmatpush1.msra.mxu0 0.0
        %1076 = vmatprep.subr.mxu0 0.0
        %1077 = vmatpush1.msra.mxu0 0.0
        %1078 = vmatprep.subr.mxu0 0.0
        %1079 = vmatpush1.msra.mxu0 0.0
        %1080 = vmatprep.mubr.f32.mxu0 0.0
        %1081 = vmatmul.mubr.f32.gmra.mrb[0].mxu0 %v1014
        %v1082 = vpop.f32.mrb[0].mxu0
        %v1083 = vadd.f32 0.0, %v1082
        %v1084 = vpop.f32.mrb[0].mxu0
        %1085 = vdwg.mxu0
        %1087 = vset.pattern.permute.xlu0 0
        %1088 = vperm.xlu0 %1087, %v841
        %v1089 = vpop.permute.xlu0 %1088
        %v1090 = vlaneseq
        %v1091 = vshrl.u32 %v1090, 7
        %v1092 = vsub.s32 %v604, %v1091
        %v1093 = vrot.slane %v1089, %v1092
        %v1094 = vsel %vm652, %v1093, 0
        %1096 = vmatprep.subr.mxu0 0.0
        %1097 = vmatpush1.msra.mxu0 %v310
        %1098 = vmatprep.subr.mxu0 0.0
        %1099 = vmatpush1.msra.mxu0 0.0
        %1100 = vmatprep.subr.mxu0 0.0
        %1101 = vmatpush1.msra.mxu0 0.0
        %1102 = vmatprep.subr.mxu0 0.0
        %1103 = vmatpush1.msra.mxu0 0.0
        %1104 = vmatprep.subr.mxu0 0.0
        %1105 = vmatpush1.msra.mxu0 0.0
        %1106 = vmatprep.subr.mxu0 0.0
        %1107 = vmatpush1.msra.mxu0 0.0
        %1108 = vmatprep.subr.mxu0 0.0
        %1109 = vmatpush1.msra.mxu0 0.0
        %1110 = vmatprep.subr.mxu0 0.0
        %1111 = vmatpush1.msra.mxu0 0.0
        %1112 = vmatprep.subr.mxu0 0.0
        %1113 = vmatpush1.msra.mxu0 0.0
        %1114 = vmatprep.subr.mxu0 0.0
        %1115 = vmatpush1.msra.mxu0 0.0
        %1116 = vmatprep.subr.mxu0 0.0
        %1117 = vmatpush1.msra.mxu0 0.0
        %1118 = vmatprep.subr.mxu0 0.0
        %1119 = vmatpush1.msra.mxu0 0.0
        %1120 = vmatprep.subr.mxu0 0.0
        %1121 = vmatpush1.msra.mxu0 0.0
        %1122 = vmatprep.subr.mxu0 0.0
        %1123 = vmatpush1.msra.mxu0 0.0
        %1124 = vmatprep.subr.mxu0 0.0
        %1125 = vmatpush1.msra.mxu0 0.0
        %1126 = vmatprep.subr.mxu0 0.0
        %1127 = vmatpush1.msra.mxu0 0.0
        %1128 = vmatprep.subr.mxu0 0.0
        %1129 = vmatpush1.msra.mxu0 0.0
        %1130 = vmatprep.subr.mxu0 0.0
        %1131 = vmatpush1.msra.mxu0 0.0
        %1132 = vmatprep.subr.mxu0 0.0
        %1133 = vmatpush1.msra.mxu0 0.0
        %1134 = vmatprep.subr.mxu0 0.0
        %1135 = vmatpush1.msra.mxu0 0.0
        %1136 = vmatprep.subr.mxu0 0.0
        %1137 = vmatpush1.msra.mxu0 0.0
        %1138 = vmatprep.subr.mxu0 0.0
        %1139 = vmatpush1.msra.mxu0 0.0
        %1140 = vmatprep.subr.mxu0 0.0
        %1141 = vmatpush1.msra.mxu0 0.0
        %1142 = vmatprep.subr.mxu0 0.0
        %1143 = vmatpush1.msra.mxu0 0.0
        %1144 = vmatprep.subr.mxu0 0.0
        %1145 = vmatpush1.msra.mxu0 0.0
        %1146 = vmatprep.subr.mxu0 0.0
        %1147 = vmatpush1.msra.mxu0 0.0
        %1148 = vmatprep.subr.mxu0 0.0
        %1149 = vmatpush1.msra.mxu0 0.0
        %1150 = vmatprep.subr.mxu0 0.0
        %1151 = vmatpush1.msra.mxu0 0.0
        %1152 = vmatprep.subr.mxu0 0.0
        %1153 = vmatpush1.msra.mxu0 0.0
        %1154 = vmatprep.subr.mxu0 0.0
        %1155 = vmatpush1.msra.mxu0 0.0
        %1156 = vmatprep.subr.mxu0 0.0
        %1157 = vmatpush1.msra.mxu0 0.0
        %1158 = vmatprep.subr.mxu0 0.0
        %1159 = vmatpush1.msra.mxu0 0.0
        %1160 = vmatprep.mubr.f32.mxu0 0.0
        %1161 = vmatmul.mubr.f32.gmra.mrb[0].mxu0 %v1094
        %v1162 = vpop.f32.mrb[0].mxu0
        %v1163 = vadd.f32 0.0, %v1162
        %v1164 = vpop.f32.mrb[0].mxu0
        %1165 = vdwg.mxu0
        %1167 = vset.pattern.permute.xlu0 0
        %1168 = vperm.xlu0 %1167, %v842
        %v1169 = vpop.permute.xlu0 %1168
        %v1170 = vlaneseq
        %v1171 = vshrl.u32 %v1170, 7
        %v1172 = vsub.s32 %v604, %v1171
        %v1173 = vrot.slane %v1169, %v1172
        %v1174 = vsel %vm652, %v1173, 0
        %1176 = vmatprep.subr.mxu0 0.0
        %1177 = vmatpush1.msra.mxu0 %v311
        %1178 = vmatprep.subr.mxu0 0.0
        %1179 = vmatpush1.msra.mxu0 0.0
        %1180 = vmatprep.subr.mxu0 0.0
        %1181 = vmatpush1.msra.mxu0 0.0
        %1182 = vmatprep.subr.mxu0 0.0
        %1183 = vmatpush1.msra.mxu0 0.0
        %1184 = vmatprep.subr.mxu0 0.0
        %1185 = vmatpush1.msra.mxu0 0.0
        %1186 = vmatprep.subr.mxu0 0.0
        %1187 = vmatpush1.msra.mxu0 0.0
        %1188 = vmatprep.subr.mxu0 0.0
        %1189 = vmatpush1.msra.mxu0 0.0
        %1190 = vmatprep.subr.mxu0 0.0
        %1191 = vmatpush1.msra.mxu0 0.0
        %1192 = vmatprep.subr.mxu0 0.0
        %1193 = vmatpush1.msra.mxu0 0.0
        %1194 = vmatprep.subr.mxu0 0.0
        %1195 = vmatpush1.msra.mxu0 0.0
        %1196 = vmatprep.subr.mxu0 0.0
        %1197 = vmatpush1.msra.mxu0 0.0
        %1198 = vmatprep.subr.mxu0 0.0
        %1199 = vmatpush1.msra.mxu0 0.0
        %1200 = vmatprep.subr.mxu0 0.0
        %1201 = vmatpush1.msra.mxu0 0.0
        %1202 = vmatprep.subr.mxu0 0.0
        %1203 = vmatpush1.msra.mxu0 0.0
        %1204 = vmatprep.subr.mxu0 0.0
        %1205 = vmatpush1.msra.mxu0 0.0
        %1206 = vmatprep.subr.mxu0 0.0
        %1207 = vmatpush1.msra.mxu0 0.0
        %1208 = vmatprep.subr.mxu0 0.0
        %1209 = vmatpush1.msra.mxu0 0.0
        %1210 = vmatprep.subr.mxu0 0.0
        %1211 = vmatpush1.msra.mxu0 0.0
        %1212 = vmatprep.subr.mxu0 0.0
        %1213 = vmatpush1.msra.mxu0 0.0
        %1214 = vmatprep.subr.mxu0 0.0
        %1215 = vmatpush1.msra.mxu0 0.0
        %1216 = vmatprep.subr.mxu0 0.0
        %1217 = vmatpush1.msra.mxu0 0.0
        %1218 = vmatprep.subr.mxu0 0.0
        %1219 = vmatpush1.msra.mxu0 0.0
        %1220 = vmatprep.subr.mxu0 0.0
        %1221 = vmatpush1.msra.mxu0 0.0
        %1222 = vmatprep.subr.mxu0 0.0
        %1223 = vmatpush1.msra.mxu0 0.0
        %1224 = vmatprep.subr.mxu0 0.0
        %1225 = vmatpush1.msra.mxu0 0.0
        %1226 = vmatprep.subr.mxu0 0.0
        %1227 = vmatpush1.msra.mxu0 0.0
        %1228 = vmatprep.subr.mxu0 0.0
        %1229 = vmatpush1.msra.mxu0 0.0
        %1230 = vmatprep.subr.mxu0 0.0
        %1231 = vmatpush1.msra.mxu0 0.0
        %1232 = vmatprep.subr.mxu0 0.0
        %1233 = vmatpush1.msra.mxu0 0.0
        %1234 = vmatprep.subr.mxu0 0.0
        %1235 = vmatpush1.msra.mxu0 0.0
        %1236 = vmatprep.subr.mxu0 0.0
        %1237 = vmatpush1.msra.mxu0 0.0
        %1238 = vmatprep.subr.mxu0 0.0
        %1239 = vmatpush1.msra.mxu0 0.0
        %1240 = vmatprep.mubr.f32.mxu0 0.0
        %1241 = vmatmul.mubr.f32.gmra.mrb[0].mxu0 %v1174
        %v1242 = vpop.f32.mrb[0].mxu0
        %v1243 = vadd.f32 0.0, %v1242
        %v1244 = vpop.f32.mrb[0].mxu0
        %1245 = vdwg.mxu0
        %1247 = vset.pattern.permute.xlu0 0
        %1248 = vperm.xlu0 %1247, %v843
        %v1249 = vpop.permute.xlu0 %1248
        %v1250 = vlaneseq
        %v1251 = vshrl.u32 %v1250, 7
        %v1252 = vsub.s32 %v604, %v1251
        %v1253 = vrot.slane %v1249, %v1252
        %v1254 = vsel %vm652, %v1253, 0
        %1256 = vmatprep.subr.mxu0 0.0
        %1257 = vmatpush1.msra.mxu0 %v312
        %1258 = vmatprep.subr.mxu0 0.0
        %1259 = vmatpush1.msra.mxu0 0.0
        %1260 = vmatprep.subr.mxu0 0.0
        %1261 = vmatpush1.msra.mxu0 0.0
        %1262 = vmatprep.subr.mxu0 0.0
        %1263 = vmatpush1.msra.mxu0 0.0
        %1264 = vmatprep.subr.mxu0 0.0
        %1265 = vmatpush1.msra.mxu0 0.0
        %1266 = vmatprep.subr.mxu0 0.0
        %1267 = vmatpush1.msra.mxu0 0.0
        %1268 = vmatprep.subr.mxu0 0.0
        %1269 = vmatpush1.msra.mxu0 0.0
        %1270 = vmatprep.subr.mxu0 0.0
        %1271 = vmatpush1.msra.mxu0 0.0
        %1272 = vmatprep.subr.mxu0 0.0
        %1273 = vmatpush1.msra.mxu0 0.0
        %1274 = vmatprep.subr.mxu0 0.0
        %1275 = vmatpush1.msra.mxu0 0.0
        %1276 = vmatprep.subr.mxu0 0.0
        %1277 = vmatpush1.msra.mxu0 0.0
        %1278 = vmatprep.subr.mxu0 0.0
        %1279 = vmatpush1.msra.mxu0 0.0
        %1280 = vmatprep.subr.mxu0 0.0
        %1281 = vmatpush1.msra.mxu0 0.0
        %1282 = vmatprep.subr.mxu0 0.0
        %1283 = vmatpush1.msra.mxu0 0.0
        %1284 = vmatprep.subr.mxu0 0.0
        %1285 = vmatpush1.msra.mxu0 0.0
        %1286 = vmatprep.subr.mxu0 0.0
        %1287 = vmatpush1.msra.mxu0 0.0
        %1288 = vmatprep.subr.mxu0 0.0
        %1289 = vmatpush1.msra.mxu0 0.0
        %1290 = vmatprep.subr.mxu0 0.0
        %1291 = vmatpush1.msra.mxu0 0.0
        %1292 = vmatprep.subr.mxu0 0.0
        %1293 = vmatpush1.msra.mxu0 0.0
        %1294 = vmatprep.subr.mxu0 0.0
        %1295 = vmatpush1.msra.mxu0 0.0
        %1296 = vmatprep.subr.mxu0 0.0
        %1297 = vmatpush1.msra.mxu0 0.0
        %1298 = vmatprep.subr.mxu0 0.0
        %1299 = vmatpush1.msra.mxu0 0.0
        %1300 = vmatprep.subr.mxu0 0.0
        %1301 = vmatpush1.msra.mxu0 0.0
        %1302 = vmatprep.subr.mxu0 0.0
        %1303 = vmatpush1.msra.mxu0 0.0
        %1304 = vmatprep.subr.mxu0 0.0
        %1305 = vmatpush1.msra.mxu0 0.0
        %1306 = vmatprep.subr.mxu0 0.0
        %1307 = vmatpush1.msra.mxu0 0.0
        %1308 = vmatprep.subr.mxu0 0.0
        %1309 = vmatpush1.msra.mxu0 0.0
        %1310 = vmatprep.subr.mxu0 0.0
        %1311 = vmatpush1.msra.mxu0 0.0
        %1312 = vmatprep.subr.mxu0 0.0
        %1313 = vmatpush1.msra.mxu0 0.0
        %1314 = vmatprep.subr.mxu0 0.0
        %1315 = vmatpush1.msra.mxu0 0.0
        %1316 = vmatprep.subr.mxu0 0.0
        %1317 = vmatpush1.msra.mxu0 0.0
        %1318 = vmatprep.subr.mxu0 0.0
        %1319 = vmatpush1.msra.mxu0 0.0
        %1320 = vmatprep.mubr.f32.mxu0 0.0
        %1321 = vmatmul.mubr.f32.gmra.mrb[0].mxu0 %v1254
        %v1322 = vpop.f32.mrb[0].mxu0
        %v1323 = vadd.f32 0.0, %v1322
        %v1324 = vpop.f32.mrb[0].mxu0
        %1325 = vdwg.mxu0
        %1327 = vset.pattern.permute.xlu0 0
        %1328 = vperm.xlu0 %1327, %v844
        %v1329 = vpop.permute.xlu0 %1328
        %v1330 = vlaneseq
        %v1331 = vshrl.u32 %v1330, 7
        %v1332 = vsub.s32 %v604, %v1331
        %v1333 = vrot.slane %v1329, %v1332
        %v1334 = vsel %vm652, %v1333, 0
        %1336 = vmatprep.subr.mxu0 0.0
        %1337 = vmatpush1.msra.mxu0 %v313
        %1338 = vmatprep.subr.mxu0 0.0
        %1339 = vmatpush1.msra.mxu0 0.0
        %1340 = vmatprep.subr.mxu0 0.0
        %1341 = vmatpush1.msra.mxu0 0.0
        %1342 = vmatprep.subr.mxu0 0.0
        %1343 = vmatpush1.msra.mxu0 0.0
        %1344 = vmatprep.subr.mxu0 0.0
        %1345 = vmatpush1.msra.mxu0 0.0
        %1346 = vmatprep.subr.mxu0 0.0
        %1347 = vmatpush1.msra.mxu0 0.0
        %1348 = vmatprep.subr.mxu0 0.0
        %1349 = vmatpush1.msra.mxu0 0.0
        %1350 = vmatprep.subr.mxu0 0.0
        %1351 = vmatpush1.msra.mxu0 0.0
        %1352 = vmatprep.subr.mxu0 0.0
        %1353 = vmatpush1.msra.mxu0 0.0
        %1354 = vmatprep.subr.mxu0 0.0
        %1355 = vmatpush1.msra.mxu0 0.0
        %1356 = vmatprep.subr.mxu0 0.0
        %1357 = vmatpush1.msra.mxu0 0.0
        %1358 = vmatprep.subr.mxu0 0.0
        %1359 = vmatpush1.msra.mxu0 0.0
        %1360 = vmatprep.subr.mxu0 0.0
        %1361 = vmatpush1.msra.mxu0 0.0
        %1362 = vmatprep.subr.mxu0 0.0
        %1363 = vmatpush1.msra.mxu0 0.0
        %1364 = vmatprep.subr.mxu0 0.0
        %1365 = vmatpush1.msra.mxu0 0.0
        %1366 = vmatprep.subr.mxu0 0.0
        %1367 = vmatpush1.msra.mxu0 0.0
        %1368 = vmatprep.subr.mxu0 0.0
        %1369 = vmatpush1.msra.mxu0 0.0
        %1370 = vmatprep.subr.mxu0 0.0
        %1371 = vmatpush1.msra.mxu0 0.0
        %1372 = vmatprep.subr.mxu0 0.0
        %1373 = vmatpush1.msra.mxu0 0.0
        %1374 = vmatprep.subr.mxu0 0.0
        %1375 = vmatpush1.msra.mxu0 0.0
        %1376 = vmatprep.subr.mxu0 0.0
        %1377 = vmatpush1.msra.mxu0 0.0
        %1378 = vmatprep.subr.mxu0 0.0
        %1379 = vmatpush1.msra.mxu0 0.0
        %1380 = vmatprep.subr.mxu0 0.0
        %1381 = vmatpush1.msra.mxu0 0.0
        %1382 = vmatprep.subr.mxu0 0.0
        %1383 = vmatpush1.msra.mxu0 0.0
        %1384 = vmatprep.subr.mxu0 0.0
        %1385 = vmatpush1.msra.mxu0 0.0
        %1386 = vmatprep.subr.mxu0 0.0
        %1387 = vmatpush1.msra.mxu0 0.0
        %1388 = vmatprep.subr.mxu0 0.0
        %1389 = vmatpush1.msra.mxu0 0.0
        %1390 = vmatprep.subr.mxu0 0.0
        %1391 = vmatpush1.msra.mxu0 0.0
        %1392 = vmatprep.subr.mxu0 0.0
        %1393 = vmatpush1.msra.mxu0 0.0
        %1394 = vmatprep.subr.mxu0 0.0
        %1395 = vmatpush1.msra.mxu0 0.0
        %1396 = vmatprep.subr.mxu0 0.0
        %1397 = vmatpush1.msra.mxu0 0.0
        %1398 = vmatprep.subr.mxu0 0.0
        %1399 = vmatpush1.msra.mxu0 0.0
        %1400 = vmatprep.mubr.f32.mxu0 0.0
        %1401 = vmatmul.mubr.f32.gmra.mrb[0].mxu0 %v1334
        %v1402 = vpop.f32.mrb[0].mxu0
        %v1403 = vadd.f32 0.0, %v1402
        %v1404 = vpop.f32.mrb[0].mxu0
        %1405 = vdwg.mxu0
        %1407 = vset.pattern.permute.xlu0 0
        %1408 = vperm.xlu0 %1407, %v845
        %v1409 = vpop.permute.xlu0 %1408
        %v1410 = vlaneseq
        %v1411 = vshrl.u32 %v1410, 7
        %v1412 = vsub.s32 %v604, %v1411
        %v1413 = vrot.slane %v1409, %v1412
        %v1414 = vsel %vm652, %v1413, 0
        %1416 = vmatprep.subr.mxu0 0.0
        %1417 = vmatpush1.msra.mxu0 %v314
        %1418 = vmatprep.subr.mxu0 0.0
        %1419 = vmatpush1.msra.mxu0 0.0
        %1420 = vmatprep.subr.mxu0 0.0
        %1421 = vmatpush1.msra.mxu0 0.0
        %1422 = vmatprep.subr.mxu0 0.0
        %1423 = vmatpush1.msra.mxu0 0.0
        %1424 = vmatprep.subr.mxu0 0.0
        %1425 = vmatpush1.msra.mxu0 0.0
        %1426 = vmatprep.subr.mxu0 0.0
        %1427 = vmatpush1.msra.mxu0 0.0
        %1428 = vmatprep.subr.mxu0 0.0
        %1429 = vmatpush1.msra.mxu0 0.0
        %1430 = vmatprep.subr.mxu0 0.0
        %1431 = vmatpush1.msra.mxu0 0.0
        %1432 = vmatprep.subr.mxu0 0.0
        %1433 = vmatpush1.msra.mxu0 0.0
        %1434 = vmatprep.subr.mxu0 0.0
        %1435 = vmatpush1.msra.mxu0 0.0
        %1436 = vmatprep.subr.mxu0 0.0
        %1437 = vmatpush1.msra.mxu0 0.0
        %1438 = vmatprep.subr.mxu0 0.0
        %1439 = vmatpush1.msra.mxu0 0.0
        %1440 = vmatprep.subr.mxu0 0.0
        %1441 = vmatpush1.msra.mxu0 0.0
        %1442 = vmatprep.subr.mxu0 0.0
        %1443 = vmatpush1.msra.mxu0 0.0
        %1444 = vmatprep.subr.mxu0 0.0
        %1445 = vmatpush1.msra.mxu0 0.0
        %1446 = vmatprep.subr.mxu0 0.0
        %1447 = vmatpush1.msra.mxu0 0.0
        %1448 = vmatprep.subr.mxu0 0.0
        %1449 = vmatpush1.msra.mxu0 0.0
        %1450 = vmatprep.subr.mxu0 0.0
        %1451 = vmatpush1.msra.mxu0 0.0
        %1452 = vmatprep.subr.mxu0 0.0
        %1453 = vmatpush1.msra.mxu0 0.0
        %1454 = vmatprep.subr.mxu0 0.0
        %1455 = vmatpush1.msra.mxu0 0.0
        %1456 = vmatprep.subr.mxu0 0.0
        %1457 = vmatpush1.msra.mxu0 0.0
        %1458 = vmatprep.subr.mxu0 0.0
        %1459 = vmatpush1.msra.mxu0 0.0
        %1460 = vmatprep.subr.mxu0 0.0
        %1461 = vmatpush1.msra.mxu0 0.0
        %1462 = vmatprep.subr.mxu0 0.0
        %1463 = vmatpush1.msra.mxu0 0.0
        %1464 = vmatprep.subr.mxu0 0.0
        %1465 = vmatpush1.msra.mxu0 0.0
        %1466 = vmatprep.subr.mxu0 0.0
        %1467 = vmatpush1.msra.mxu0 0.0
        %1468 = vmatprep.subr.mxu0 0.0
        %1469 = vmatpush1.msra.mxu0 0.0
        %1470 = vmatprep.subr.mxu0 0.0
        %1471 = vmatpush1.msra.mxu0 0.0
        %1472 = vmatprep.subr.mxu0 0.0
        %1473 = vmatpush1.msra.mxu0 0.0
        %1474 = vmatprep.subr.mxu0 0.0
        %1475 = vmatpush1.msra.mxu0 0.0
        %1476 = vmatprep.subr.mxu0 0.0
        %1477 = vmatpush1.msra.mxu0 0.0
        %1478 = vmatprep.subr.mxu0 0.0
        %1479 = vmatpush1.msra.mxu0 0.0
        %1480 = vmatprep.mubr.f32.mxu0 0.0
        %1481 = vmatmul.mubr.f32.gmra.mrb[0].mxu0 %v1414
        %v1482 = vpop.f32.mrb[0].mxu0
        %v1483 = vadd.f32 0.0, %v1482
        %v1484 = vpop.f32.mrb[0].mxu0
        %1485 = vdwg.mxu0
        %vm1486 = vcmask 253952
        %1487 = vst.msk [vmem:[%s294] sm:$0x1] %vm1486, %v923
        %1488 = vst.msk [vmem:[%s294 + $0x1] sm:$0x1] %vm1486, %v1003
        %1489 = vst.msk [vmem:[%s294 + $0x2] sm:$0x1] %vm1486, %v1083
        %1490 = vst.msk [vmem:[%s294 + $0x3] sm:$0x1] %vm1486, %v1163
        %1491 = vst.msk [vmem:[%s294 + $0x4] sm:$0x1] %vm1486, %v1243
        %1492 = vst.msk [vmem:[%s294 + $0x5] sm:$0x1] %vm1486, %v1323
        %1493 = vst.msk [vmem:[%s294 + $0x6] sm:$0x1] %vm1486, %v1403
        %1494 = vst.msk [vmem:[%s294 + $0x7] sm:$0x1] %vm1486, %v1483
        %v1495 = vsel %vm637, %v933, %v853
        %v1496 = vsel %vm639, %v1013, %v1495
        %v1497 = vsel %vm641, %v1093, %v1496
        %v1498 = vsel %vm643, %v1173, %v1497
        %v1499 = vsel %vm645, %v1253, %v1498
        %v1500 = vsel %vm647, %v1333, %v1499
        %v1501 = vsel %vm649, %v1413, %v1500
        %1503 = vst.msk [vmem:[%s306] sm:$0xff] %vm652, %v1501
        %s1504 = sand.u32 %s128, 1
        %s1505 = scalar_lea.sflag [#allocation4], %s1504
        %s1506 = sand.u32 %s128, 1
        %s1507 = smul.addr %s1506, 8
        %s1508 = scalar_lea.vmem [#allocation8], %s1507
        %p1509 = scmp.lt.s32.totalorder %s26, 1
        %s1510 = scalar_select %p1509, %s26, 1
        %s1511 = smul.addr %s1510, 8
        %s1512 = scalar_lea.vmem %s5, %s1511
        // Predicated region
        $region49: #{tpu_custom_call.1} parent=35 // pred_check
          %p1513 = pneg %p138
        $region50: #{tpu_custom_call.1} parent=35 // pred_check_branch
          %1515 = sbr.rel (%p1513) target = $region52
        $region51: #{tpu_custom_call.1} parent=35 // pred_region
          %s1516 = smul.u32 8, %s26
          %s1518 = ssub.s32 128, 128
          %1519 = vsyncadd %s1505, %s1518
          %s1520 = smul.addr %s1516, 16
          %s1521 = scalar_lea.hbm %s4, %s1520
          %s1522 = sshll.u32 %s1508, 4
          %s1523 = int_to_ptr.vmem [resolvable:$true] %s1522
          %1528 = dma.vmem_to_hbm [thread:$0]  %s1523, 128, %s1521, %s1505, 16, 16, 1
        $region52: #{tpu_custom_call.1} parent=35 // pred_fallthru
          _
        // Predicated region
        $region53: #{tpu_custom_call.1} parent=35 // pred_check
          %p1529 = pneg %p164
        $region54: #{tpu_custom_call.1} parent=35 // pred_check_branch
          %1531 = sbr.rel (%p1529) target = $region56
        $region55: #{tpu_custom_call.1} parent=35 // pred_region
          _
        $region56: #{tpu_custom_call.1} parent=35 // pred_fallthru
          _
      $region36: #{tpu_custom_call.1} parent=5 // pred_fallthru
        _
      %p1532 = scmp.le.s32.totalorder 2, %s21
      // Predicated region
      $region57: #{tpu_custom_call.1} parent=5 // pred_check
        %p1533 = pneg %p1532
      $region58: #{tpu_custom_call.1} parent=5 // pred_check_branch
        %1535 = sbr.rel (%p1533) target = $region60
      $region59: #{tpu_custom_call.1} parent=5 // pred_region
        %s1536 = ssub.s32 %s21, 2
        // Predicated region
        $region61: #{tpu_custom_call.1} parent=59 // pred_check
          %p1537 = pneg %p144
        $region62: #{tpu_custom_call.1} parent=59 // pred_check_branch
          %1539 = sbr.rel (%p1537) target = $region64
        $region63: #{tpu_custom_call.1} parent=59 // pred_region
          %s1540 = sand.u32 %s129, 1
          %s1541 = scalar_lea.sflag [#allocation4], %s1540
          %s1542 = sand.u32 %s129, 1
          %s1543 = smul.addr %s1542, 8
          %s1544 = scalar_lea.vmem [#allocation8], %s1543
          %1545 = dma.done %s1541, 128
        $region64: #{tpu_custom_call.1} parent=59 // pred_fallthru
          _
        // Predicated region
        $region65: #{tpu_custom_call.1} parent=59 // pred_check
          %p1546 = pneg %p170
        $region66: #{tpu_custom_call.1} parent=59 // pred_check_branch
          %1548 = sbr.rel (%p1546) target = $region68
        $region67: #{tpu_custom_call.1} parent=59 // pred_region
          %p1549 = scmp.lt.s32.totalorder %s27, 1
          %s1550 = scalar_select %p1549, %s27, 1
          %s1551 = smul.addr %s1550, 8
          %s1552 = scalar_lea.vmem %s5, %s1551
        $region68: #{tpu_custom_call.1} parent=59 // pred_fallthru
          _
      $region60: #{tpu_custom_call.1} parent=5 // pred_fallthru
        _
    $region6: #{tpu_custom_call.1} parent=1 // loop_footer
      %s25 = sadd.s32 1, %s21
    $region7: #{tpu_custom_call.1} parent=1 // loop_footer_branch
      %20 = sbr.rel target = $region3
    $region8: #{tpu_custom_call.1} parent=1 // loop_exit
      _
    %1553 = vsyncpa [#allocation3], 1
    %s1554 = scalar_lea.sflag [#allocation3], 1
    %1555 = vsyncpa %s1554, 1
    %1556 = vsyncpa [#allocation6], 1
    %s1557 = scalar_lea.sflag [#allocation6], 1
    %1558 = vsyncpa %s1557, 1
    %1559 = vsyncpa [#allocation4], 1
    %s1560 = scalar_lea.sflag [#allocation4], 1
    %1561 = vsyncpa %s1560, 1

</llo_original>
